<compile_context>
chip_gen: v5e
topology: v5e:2x2
jax: 0.10.0
libtpu: 0.0.40
codegen_flags: <defaults>
</compile_context>

<pallas_src>
import functools

import jax
import jax.numpy as jnp
from jax.experimental import pallas as pl
from jax.experimental.pallas import tpu as pltpu


def _round_up(x: int, m: int) -> int:
    return (x + m - 1) // m * m


def category_encoder_kernel(ids_ref, table_ref, bias_ref, out_ref):
    """One grid step: a (tile_b,)-row slice of the batch.

    ids_ref   : (tile_b, 1)      int32    category ids for this tile
    table_ref : (C_pad, O_pad)   bfloat16 fused (Embedding @ W^T) table, resident
    bias_ref  : (1, O_pad)       float32  linear bias, resident
    out_ref   : (tile_b, O_pad)  f32/bf16 relu(linear(embedding(ids)))
    """
    ids = ids_ref[...]                                   # (tile_b, 1)
    tile_b = ids.shape[0]
    c_pad = table_ref.shape[0]

    # One-hot row-selection matrix; 0/1 values are exact in bf16.
    iota = jax.lax.broadcasted_iota(jnp.int32, (tile_b, c_pad), 1)
    onehot = (iota == ids).astype(jnp.bfloat16)          # (tile_b, C_pad)

    # Single MXU matmul (bf16 operands, f32 accumulation) = fused
    # embedding-gather + linear.
    acc = jnp.dot(onehot, table_ref[...],
                  preferred_element_type=jnp.float32)    # (tile_b, O_pad) f32

    out = acc + bias_ref[...]                            # broadcast (1, O_pad)
    out_ref[...] = jnp.maximum(out, 0.0).astype(out_ref.dtype)


def prepare_category_encoder_params(emb_table, w_t, bias):
    """ONE-TIME weight prep (call once per weight update, outside the forward).

    emb_table : (C, E) float32 embedding table (row 0 zeroed by caller,
                matching PyTorch's padding_idx=0).
    w_t       : (E, O) float32 transposed nn.Linear weight.
    bias      : (O,)   float32 nn.Linear bias.

    Returns (fused_bf16 (C_pad, O_pad), bias_p (1, O_pad), out_dim).
    """
    C, _E = emb_table.shape
    O = int(w_t.shape[1])

    fused = jnp.dot(emb_table, w_t)                      # (C, O) f32

    # Lane-dense padding: last dims multiples of 128 (and no more -- see header).
    C_pad = _round_up(C, 128)
    O_pad = _round_up(O, 128)

    fused_p = jnp.zeros((C_pad, O_pad), jnp.float32).at[:C, :O].set(fused)
    fused_bf16 = fused_p.astype(jnp.bfloat16)
    bias_p = jnp.zeros((1, O_pad), jnp.float32).at[0, :O].set(bias)
    return fused_bf16, bias_p, O


def _pick_tile(batch: int, tile_b: int) -> int:
    """Pick a B-tile: multiple of 128, <= requested, and >=2 grid steps when
    the batch is large enough (so v7x's two TensorCores both get work)."""
    b128 = _round_up(max(batch, 1), 128)
    tile = min(_round_up(max(tile_b, 128), 128), b128)
    if tile == b128 and b128 >= 256:
        tile = _round_up(b128 // 2, 128)
    return tile


@functools.partial(jax.jit, static_argnames=("out_dim", "tile_b", "out_dtype"))
def category_encoder(category_ids, fused_bf16, bias_p, *, out_dim,
                     tile_b: int = 512, out_dtype=jnp.float32):
    """Forward pass of CategoryEncoder.

    category_ids : (B,)            int32    category indices (0 == padding)
    fused_bf16   : (C_pad, O_pad)  bfloat16 from prepare_category_encoder_params
    bias_p       : (1, O_pad)      float32  from prepare_category_encoder_params
    out_dim      : static int      original Linear output dim O
    returns      : (B, out_dim)    out_dtype
    """
    B = category_ids.shape[0]
    C_pad, O_pad = fused_bf16.shape

    tile = _pick_tile(B, tile_b)
    B_pad = _round_up(max(B, 1), tile)
    grid = (B_pad // tile,)

    ids_p = jnp.zeros((B_pad, 1), jnp.int32).at[:B, 0].set(
        category_ids.astype(jnp.int32))

    # VMEM budget; raise the scoped limit only if we approach v5e's 16 MiB
    # default (table counted double-buffered to stay conservative).
    out_itemsize = jnp.dtype(out_dtype).itemsize
    vmem_budget = (2 * tile * 128 * 4            # ids blocks (padded to 128 lanes)
                   + 2 * C_pad * O_pad * 2       # resident bf16 table
                   + 2 * 8 * O_pad * 4           # bias
                   + 2 * tile * O_pad * out_itemsize)  # output blocks
    vmem_limit = None
    if vmem_budget > 12 * 1024 * 1024:
        vmem_limit = min(int(vmem_budget * 1.25) + (4 << 20), 100 << 20)

    out_p = pl.pallas_call(
        category_encoder_kernel,
        out_shape=jax.ShapeDtypeStruct((B_pad, O_pad), out_dtype),
        grid_spec=pltpu.PrefetchScalarGridSpec(
            num_scalar_prefetch=0,
            grid=grid,
            in_specs=[
                # per-tile ids block, streamed/pipelined across the grid
                pl.BlockSpec((tile, 1), lambda i: (i, 0)),
                # fused table: constant block index -> DMA'd once, VMEM-resident
                pl.BlockSpec((C_pad, O_pad), lambda i: (0, 0)),
                # bias: constant block index -> VMEM-resident
                pl.BlockSpec((1, O_pad), lambda i: (0, 0)),
            ],
            out_specs=pl.BlockSpec((tile, O_pad), lambda i: (i, 0)),
        ),
        compiler_params=pltpu.CompilerParams(
            dimension_semantics=("parallel",),
            vmem_limit_bytes=vmem_limit),
    )(ids_p, fused_bf16, bias_p)

    return out_p[:B, :out_dim]


if __name__ == "__main__":
    # Small deterministic setup consistent with the module's __init__ shapes.
    num_categories = 16        # nn.Embedding(num_embeddings=...)
    category_embedding_dim = 32
    category_output_dim = 64
    batch = 8

    key = jax.random.PRNGKey(0)
    k_emb, k_w, k_b, k_ids = jax.random.split(key, 4)

    # Embedding table; padding_idx=0 -> row 0 is zeros (PyTorch zero-inits it).
    emb_table = jax.random.normal(
        k_emb, (num_categories, category_embedding_dim), dtype=jnp.float32)
    emb_table = emb_table.at[0].set(0.0)

    # Linear params (PyTorch weight is (out, in); we store its transpose).
    bound = 1.0 / jnp.sqrt(category_embedding_dim)
    w_torch = jax.random.uniform(
        k_w, (category_output_dim, category_embedding_dim),
        minval=-bound, maxval=bound, dtype=jnp.float32)
    bias = jax.random.uniform(
        k_b, (category_output_dim,), minval=-bound, maxval=bound,
        dtype=jnp.float32)
    w_t = w_torch.T  # (E, O)

    # One-time weight prep (fold Linear into table, pad, cast bf16).
    fused_bf16, bias_p, out_dim = prepare_category_encoder_params(
        emb_table, w_t, bias)
    fused_bf16 = jax.block_until_ready(fused_bf16)

    # Category ids, including index 0 (the padding index).
    category = jax.random.randint(
        k_ids, (batch,), minval=0, maxval=num_categories, dtype=jnp.int32)
    category = category.at[0].set(0)

    out = category_encoder(category, fused_bf16, bias_p, out_dim=out_dim)
    out = jax.block_until_ready(out)

    # Reference in plain f32 JAX (embedding gather + linear + relu).  The
    # kernel uses a bf16 fused table (f32 accumulation), so tolerance is
    # loosened accordingly.
    ref = jnp.maximum(emb_table[category] @ w_t + bias, 0.0)
    assert out.shape == (batch, category_output_dim)
    assert jnp.allclose(out, ref, atol=1e-2, rtol=1e-2), (
        float(jnp.max(jnp.abs(out - ref))))

    print("KERNEL_OK")
</pallas_src>

<mosaic_0001>
module attributes {stable_mosaic.version = 11 : i64} {
  func.func @category_encoder_kernel(%arg0: i32, %arg1: memref<128x1xi32, #tpu.memory_space<vmem>>, %arg2: memref<128x128xbf16, #tpu.memory_space<vmem>>, %arg3: memref<1x128xf32, #tpu.memory_space<vmem>>, %arg4: memref<128x128xf32, #tpu.memory_space<vmem>>) attributes {dimension_semantics = [#tpu.dimension_semantics<parallel>], iteration_bounds = array<i64: 1>, scalar_prefetch = 0 : i64, scratch_operands = 0 : i64, tpu.core_type = #tpu.core_type<tc>, window_params = [{transform_indices = @transform_0, window_bounds = array<i64: 128, 1>}, {pipeline_mode = #tpu.pipeline_mode<synchronous>, transform_indices = @transform_1, window_bounds = array<i64: 128, 128>}, {pipeline_mode = #tpu.pipeline_mode<synchronous>, transform_indices = @transform_2, window_bounds = array<i64: 1, 128>}, {transform_indices = @transform_3, window_bounds = array<i64: 128, 128>}]} {
    %c0 = arith.constant 0 : index
    %c0_0 = arith.constant 0 : index
    %0 = vector.load %arg1[%c0, %c0_0] : memref<128x1xi32, #tpu.memory_space<vmem>>, vector<128x1xi32>
    %1 = tpu.iota {dimensions = array<i32: 1>} : vector<128x128xi32>
    %2 = vector.broadcast %0 : vector<128x1xi32> to vector<128x128xi32>
    %3 = arith.cmpi eq, %1, %2 : vector<128x128xi32>
    %4 = arith.extui %3 : vector<128x128xi1> to vector<128x128xi32>
    %5 = arith.sitofp %4 : vector<128x128xi32> to vector<128x128xf32>
    %6 = arith.truncf %5 : vector<128x128xf32> to vector<128x128xbf16>
    %c0_1 = arith.constant 0 : index
    %c0_2 = arith.constant 0 : index
    %7 = vector.load %arg2[%c0_1, %c0_2] : memref<128x128xbf16, #tpu.memory_space<vmem>>, vector<128x128xbf16>
    %cst = arith.constant dense<0.000000e+00> : vector<128x128xf32>
    %8 = tpu.matmul %6, %7, %cst {dimension_numbers = #tpu.dot_dimension_numbers<[1], [0], [0], [1], [0, 0, 1, 1], [], []>} : vector<128x128xbf16>, vector<128x128xbf16>, vector<128x128xf32> -> vector<128x128xf32>
    %c0_3 = arith.constant 0 : index
    %c0_4 = arith.constant 0 : index
    %9 = vector.load %arg3[%c0_3, %c0_4] : memref<1x128xf32, #tpu.memory_space<vmem>>, vector<1x128xf32>
    %10 = vector.broadcast %9 : vector<1x128xf32> to vector<128x128xf32>
    %11 = arith.addf %8, %10 : vector<128x128xf32>
    %cst_5 = arith.constant 0.000000e+00 : f32
    %12 = vector.broadcast %cst_5 : f32 to vector<128x128xf32>
    %13 = arith.maximumf %11, %12 : vector<128x128xf32>
    %c0_6 = arith.constant 0 : index
    %c0_7 = arith.constant 0 : index
    %14 = vector.load %arg4[%c0_6, %c0_7] : memref<128x128xf32, #tpu.memory_space<vmem>>, vector<128x128xf32>
    tpu.vector_store %arg4[%c0_6, %c0_7], %13 {strides = array<i32>} : memref<128x128xf32, #tpu.memory_space<vmem>>, vector<128x128xf32>,
    return
  }
  func.func @transform_0(%arg0: i32) -> (i32, i32) {
    %c0_i32 = arith.constant 0 : i32
    %c0_i32_0 = arith.constant 0 : i32
    return %arg0, %c0_i32 : i32, i32
  }
  func.func @transform_1(%arg0: i32) -> (i32, i32) {
    %c0_i32 = arith.constant 0 : i32
    %c0_i32_0 = arith.constant 0 : i32
    %c0_i32_1 = arith.constant 0 : i32
    return %c0_i32, %c0_i32_0 : i32, i32
  }
  func.func @transform_2(%arg0: i32) -> (i32, i32) {
    %c0_i32 = arith.constant 0 : i32
    %c0_i32_0 = arith.constant 0 : i32
    %c0_i32_1 = arith.constant 0 : i32
    return %c0_i32, %c0_i32_0 : i32, i32
  }
  func.func @transform_3(%arg0: i32) -> (i32, i32) {
    %c0_i32 = arith.constant 0 : i32
    %c0_i32_0 = arith.constant 0 : i32
    return %arg0, %c0_i32 : i32, i32
  }
}

</mosaic_0001>

<llo_original>
// kernel: category_encoder.1
$region0: #{category_encoder.1}
  #allocation0 [shape = 'u32[]', space=smem, size = 0x4, offset = 0x4, fixed_abs, tag = 'smem constant byte address 0x4 - core index']
  #allocation1 [shape = 'u32[72,128]{1,0:T(1,128)}', space=vmem, size = 0x9000, scoped, tag = 'internal scratch']
  %s0 = inlined_call_operand.vmem [shape: s32[128,1], index: 0, kind: input, shape index: {}]
  %s1 = inlined_call_operand.vmem [shape: bf16[128,128], index: 1, kind: input, shape index: {}]
  %s2 = inlined_call_operand.vmem [shape: f32[1,128], index: 2, kind: input, shape index: {}]
  %s3 = inlined_call_operand.vmem [shape: f32[128,128], index: 3, kind: output, shape index: {}]
  %s4 = sld [smem:[#allocation0]]
  $region22: #{category_encoder.1} parent=0
    _
  %s6 = ssub.s32 1, %s4
  %s7 = scalar_select 0, %s6, %s4
  // Predicated region
  $region2: #{category_encoder.1} parent=0 // pred_check
    _
  $region3: #{category_encoder.1} parent=0 // pred_check_branch
    %9 = sbr.rel (0) target = $region5
  $region4: #{category_encoder.1} parent=0 // pred_region
    _
  $region5: #{category_encoder.1} parent=0 // pred_fallthru
    _
  // Predicated region
  $region6: #{category_encoder.1} parent=0 // pred_check
    _
  $region7: #{category_encoder.1} parent=0 // pred_check_branch
    %11 = sbr.rel (0) target = $region9
  $region8: #{category_encoder.1} parent=0 // pred_region
    _
  $region9: #{category_encoder.1} parent=0 // pred_fallthru
    _
  // Predicated region
  $region10: #{category_encoder.1} parent=0 // pred_check
    _
  $region11: #{category_encoder.1} parent=0 // pred_check_branch
    %13 = sbr.rel (0) target = $region13
  $region12: #{category_encoder.1} parent=0 // pred_region
    _
  $region13: #{category_encoder.1} parent=0 // pred_fallthru
    _
  %v14 = vld [vmem:[%s0] sm:$0xff]
  %v15 = vld [vmem:[%s0 + $0x8] sm:$0xff]
  %v16 = vld [vmem:[%s0 + $0x10] sm:$0xff]
  %v17 = vld [vmem:[%s0 + $0x18] sm:$0xff]
  %v18 = vld [vmem:[%s0 + $0x20] sm:$0xff]
  %v19 = vld [vmem:[%s0 + $0x28] sm:$0xff]
  %v20 = vld [vmem:[%s0 + $0x30] sm:$0xff]
  %v21 = vld [vmem:[%s0 + $0x38] sm:$0xff]
  %v22 = vld [vmem:[%s0 + $0x40] sm:$0xff]
  %v23 = vld [vmem:[%s0 + $0x48] sm:$0xff]
  %v24 = vld [vmem:[%s0 + $0x50] sm:$0xff]
  %v25 = vld [vmem:[%s0 + $0x58] sm:$0xff]
  %v26 = vld [vmem:[%s0 + $0x60] sm:$0xff]
  %v27 = vld [vmem:[%s0 + $0x68] sm:$0xff]
  %v28 = vld [vmem:[%s0 + $0x70] sm:$0xff]
  %v29 = vld [vmem:[%s0 + $0x78] sm:$0xff]
  %v30 = vlaneseq
  %v31 = vand.u32 %v30, 127
  %32 = vset.pattern.permute.xlu0 0
  %33 = vperm.xlu0 %32, %v14
  %v34 = vpop.permute.xlu0 %33
  %35 = vset.pattern.permute.xlu0 0
  %36 = vperm.xlu0 %35, %v15
  %v37 = vpop.permute.xlu0 %36
  %38 = vset.pattern.permute.xlu0 0
  %39 = vperm.xlu0 %38, %v16
  %v40 = vpop.permute.xlu0 %39
  %41 = vset.pattern.permute.xlu0 0
  %42 = vperm.xlu0 %41, %v17
  %v43 = vpop.permute.xlu0 %42
  %44 = vset.pattern.permute.xlu0 0
  %45 = vperm.xlu0 %44, %v18
  %v46 = vpop.permute.xlu0 %45
  %47 = vset.pattern.permute.xlu0 0
  %48 = vperm.xlu0 %47, %v19
  %v49 = vpop.permute.xlu0 %48
  %50 = vset.pattern.permute.xlu0 0
  %51 = vperm.xlu0 %50, %v20
  %v52 = vpop.permute.xlu0 %51
  %53 = vset.pattern.permute.xlu0 0
  %54 = vperm.xlu0 %53, %v21
  %v55 = vpop.permute.xlu0 %54
  %56 = vset.pattern.permute.xlu0 0
  %57 = vperm.xlu0 %56, %v22
  %v58 = vpop.permute.xlu0 %57
  %59 = vset.pattern.permute.xlu0 0
  %60 = vperm.xlu0 %59, %v23
  %v61 = vpop.permute.xlu0 %60
  %62 = vset.pattern.permute.xlu0 0
  %63 = vperm.xlu0 %62, %v24
  %v64 = vpop.permute.xlu0 %63
  %65 = vset.pattern.permute.xlu0 0
  %66 = vperm.xlu0 %65, %v25
  %v67 = vpop.permute.xlu0 %66
  %68 = vset.pattern.permute.xlu0 0
  %69 = vperm.xlu0 %68, %v26
  %v70 = vpop.permute.xlu0 %69
  %71 = vset.pattern.permute.xlu0 0
  %72 = vperm.xlu0 %71, %v27
  %v73 = vpop.permute.xlu0 %72
  %74 = vset.pattern.permute.xlu0 0
  %75 = vperm.xlu0 %74, %v28
  %v76 = vpop.permute.xlu0 %75
  %77 = vset.pattern.permute.xlu0 0
  %78 = vperm.xlu0 %77, %v29
  %v79 = vpop.permute.xlu0 %78
  %vm80 = vcmp.eq.s32.totalorder %v31, %v34
  %vm81 = vcmp.eq.s32.totalorder %v31, %v37
  %vm82 = vcmp.eq.s32.totalorder %v31, %v40
  %vm83 = vcmp.eq.s32.totalorder %v31, %v43
  %vm84 = vcmp.eq.s32.totalorder %v31, %v46
  %vm85 = vcmp.eq.s32.totalorder %v31, %v49
  %vm86 = vcmp.eq.s32.totalorder %v31, %v52
  %vm87 = vcmp.eq.s32.totalorder %v31, %v55
  %vm88 = vcmp.eq.s32.totalorder %v31, %v58
  %vm89 = vcmp.eq.s32.totalorder %v31, %v61
  %vm90 = vcmp.eq.s32.totalorder %v31, %v64
  %vm91 = vcmp.eq.s32.totalorder %v31, %v67
  %vm92 = vcmp.eq.s32.totalorder %v31, %v70
  %vm93 = vcmp.eq.s32.totalorder %v31, %v73
  %vm94 = vcmp.eq.s32.totalorder %v31, %v76
  %vm95 = vcmp.eq.s32.totalorder %v31, %v79
  %v96 = vsel %vm80, 1, 0
  %v97 = vsel %vm81, 1, 0
  %v98 = vsel %vm82, 1, 0
  %v99 = vsel %vm83, 1, 0
  %v100 = vsel %vm84, 1, 0
  %v101 = vsel %vm85, 1, 0
  %v102 = vsel %vm86, 1, 0
  %v103 = vsel %vm87, 1, 0
  %v104 = vsel %vm88, 1, 0
  %v105 = vsel %vm89, 1, 0
  %v106 = vsel %vm90, 1, 0
  %v107 = vsel %vm91, 1, 0
  %v108 = vsel %vm92, 1, 0
  %v109 = vsel %vm93, 1, 0
  %v110 = vsel %vm94, 1, 0
  %v111 = vsel %vm95, 1, 0
  %v112 = vcvt.s32.f32 %v96
  %v113 = vcvt.s32.f32 %v97
  %v114 = vcvt.s32.f32 %v98
  %v115 = vcvt.s32.f32 %v99
  %v116 = vcvt.s32.f32 %v100
  %v117 = vcvt.s32.f32 %v101
  %v118 = vcvt.s32.f32 %v102
  %v119 = vcvt.s32.f32 %v103
  %v120 = vcvt.s32.f32 %v104
  %v121 = vcvt.s32.f32 %v105
  %v122 = vcvt.s32.f32 %v106
  %v123 = vcvt.s32.f32 %v107
  %v124 = vcvt.s32.f32 %v108
  %v125 = vcvt.s32.f32 %v109
  %v126 = vcvt.s32.f32 %v110
  %v127 = vcvt.s32.f32 %v111
  %v128 = vpack.c.bf16 %v113, %v112
  %v129 = vpack.c.bf16 %v115, %v114
  %v130 = vpack.c.bf16 %v117, %v116
  %v131 = vpack.c.bf16 %v119, %v118
  %v132 = vpack.c.bf16 %v121, %v120
  %v133 = vpack.c.bf16 %v123, %v122
  %v134 = vpack.c.bf16 %v125, %v124
  %v135 = vpack.c.bf16 %v127, %v126
  %v136 = vld [vmem:[%s1] sm:$0xf]
  %v137 = vld [vmem:[%s1 + $0x4] sm:$0xf]
  %v138 = vld [vmem:[%s1 + $0x8] sm:$0xf]
  %v139 = vld [vmem:[%s1 + $0xc] sm:$0xf]
  %v140 = vld [vmem:[%s1 + $0x10] sm:$0xf]
  %v141 = vld [vmem:[%s1 + $0x14] sm:$0xf]
  %v142 = vld [vmem:[%s1 + $0x18] sm:$0xf]
  %v143 = vld [vmem:[%s1 + $0x1c] sm:$0xf]
  %v144 = vld [vmem:[%s1 + $0x20] sm:$0xf]
  %v145 = vld [vmem:[%s1 + $0x24] sm:$0xf]
  %v146 = vld [vmem:[%s1 + $0x28] sm:$0xf]
  %v147 = vld [vmem:[%s1 + $0x2c] sm:$0xf]
  %v148 = vld [vmem:[%s1 + $0x30] sm:$0xf]
  %v149 = vld [vmem:[%s1 + $0x34] sm:$0xf]
  %v150 = vld [vmem:[%s1 + $0x38] sm:$0xf]
  %v151 = vld [vmem:[%s1 + $0x3c] sm:$0xf]
  %v152 = vld [vmem:[%s2] sm:$0x1]
  %v154 = vperm.slane %v152, 0
  %v172 = vunpack.c.l.b16 %v136
  %v173 = vunpack.c.l.b16 %v137
  %v174 = vunpack.c.l.b16 %v138
  %v175 = vunpack.c.l.b16 %v139
  %v176 = vunpack.c.l.b16 %v140
  %v177 = vunpack.c.l.b16 %v141
  %v178 = vunpack.c.l.b16 %v142
  %v179 = vunpack.c.l.b16 %v143
  %v180 = vunpack.c.l.b16 %v144
  %v181 = vunpack.c.l.b16 %v145
  %v182 = vunpack.c.l.b16 %v146
  %v183 = vunpack.c.l.b16 %v147
  %v184 = vunpack.c.l.b16 %v148
  %v185 = vunpack.c.l.b16 %v149
  %v186 = vunpack.c.l.b16 %v150
  %v187 = vunpack.c.l.b16 %v151
  %v188 = vpack.c.b16 %v173, %v172
  %v189 = vpack.c.b16 %v175, %v174
  %v190 = vpack.c.b16 %v177, %v176
  %v191 = vpack.c.b16 %v179, %v178
  %v192 = vpack.c.b16 %v181, %v180
  %v193 = vpack.c.b16 %v183, %v182
  %v194 = vpack.c.b16 %v185, %v184
  %v195 = vpack.c.b16 %v187, %v186
  %204 = vmatpush.bf16.msra.mxu0 %v195
  %205 = vmatpush.bf16.msra.mxu0 %v194
  %206 = vmatpush.bf16.msra.mxu0 %v193
  %207 = vmatpush.bf16.msra.mxu0 %v192
  %208 = vmatpush.bf16.msra.mxu0 %v191
  %209 = vmatpush.bf16.msra.mxu0 %v190
  %210 = vmatpush.bf16.msra.mxu0 %v189
  %211 = vmatpush.bf16.msra.mxu0 %v188
  %212 = vmatmul.bf16.gmra.mxu0 %v128
  %v213 = vpop.f32.mrf.mxu0
  %v214 = vadd.f32 %v154, %v213
  %v215 = vpop.f32.mrf.mxu0
  %v216 = vadd.f32 %v154, %v215
  %217 = vmatmul.bf16.gmra.mxu0 %v129
  %v218 = vpop.f32.mrf.mxu0
  %v219 = vadd.f32 %v154, %v218
  %v220 = vpop.f32.mrf.mxu0
  %v221 = vadd.f32 %v154, %v220
  %222 = vmatmul.bf16.gmra.mxu0 %v130
  %v223 = vpop.f32.mrf.mxu0
  %v224 = vadd.f32 %v154, %v223
  %v225 = vpop.f32.mrf.mxu0
  %v226 = vadd.f32 %v154, %v225
  %227 = vmatmul.bf16.gmra.mxu0 %v131
  %v228 = vpop.f32.mrf.mxu0
  %v229 = vadd.f32 %v154, %v228
  %v230 = vpop.f32.mrf.mxu0
  %v231 = vadd.f32 %v154, %v230
  %232 = vmatmul.bf16.gmra.mxu0 %v132
  %v233 = vpop.f32.mrf.mxu0
  %v234 = vadd.f32 %v154, %v233
  %v235 = vpop.f32.mrf.mxu0
  %v236 = vadd.f32 %v154, %v235
  %237 = vmatmul.bf16.gmra.mxu0 %v133
  %v238 = vpop.f32.mrf.mxu0
  %v239 = vadd.f32 %v154, %v238
  %v240 = vpop.f32.mrf.mxu0
  %v241 = vadd.f32 %v154, %v240
  %242 = vmatmul.bf16.gmra.mxu0 %v134
  %v243 = vpop.f32.mrf.mxu0
  %v244 = vadd.f32 %v154, %v243
  %v245 = vpop.f32.mrf.mxu0
  %v246 = vadd.f32 %v154, %v245
  %247 = vmatmul.bf16.gmra.mxu0 %v135
  %v248 = vpop.f32.mrf.mxu0
  %v249 = vadd.f32 %v154, %v248
  %v250 = vpop.f32.mrf.mxu0
  %v251 = vadd.f32 %v154, %v250
  %252 = vdwg.mxu0
  %v253 = vmax.f32 %v214, 0.0
  %v254 = vmax.f32 %v216, 0.0
  %v255 = vmax.f32 %v219, 0.0
  %v256 = vmax.f32 %v221, 0.0
  %v257 = vmax.f32 %v224, 0.0
  %v258 = vmax.f32 %v226, 0.0
  %v259 = vmax.f32 %v229, 0.0
  %v260 = vmax.f32 %v231, 0.0
  %v261 = vmax.f32 %v234, 0.0
  %v262 = vmax.f32 %v236, 0.0
  %v263 = vmax.f32 %v239, 0.0
  %v264 = vmax.f32 %v241, 0.0
  %v265 = vmax.f32 %v244, 0.0
  %v266 = vmax.f32 %v246, 0.0
  %v267 = vmax.f32 %v249, 0.0
  %v268 = vmax.f32 %v251, 0.0
  %269 = vst [vmem:[%s3] sm:$0xff] %v253
  %270 = vst [vmem:[%s3 + $0x8] sm:$0xff] %v254
  %271 = vst [vmem:[%s3 + $0x10] sm:$0xff] %v255
  %272 = vst [vmem:[%s3 + $0x18] sm:$0xff] %v256
  %273 = vst [vmem:[%s3 + $0x20] sm:$0xff] %v257
  %274 = vst [vmem:[%s3 + $0x28] sm:$0xff] %v258
  %275 = vst [vmem:[%s3 + $0x30] sm:$0xff] %v259
  %276 = vst [vmem:[%s3 + $0x38] sm:$0xff] %v260
  %277 = vst [vmem:[%s3 + $0x40] sm:$0xff] %v261
  %278 = vst [vmem:[%s3 + $0x48] sm:$0xff] %v262
  %279 = vst [vmem:[%s3 + $0x50] sm:$0xff] %v263
  %280 = vst [vmem:[%s3 + $0x58] sm:$0xff] %v264
  %281 = vst [vmem:[%s3 + $0x60] sm:$0xff] %v265
  %282 = vst [vmem:[%s3 + $0x68] sm:$0xff] %v266
  %283 = vst [vmem:[%s3 + $0x70] sm:$0xff] %v267
  %284 = vst [vmem:[%s3 + $0x78] sm:$0xff] %v268
  // Predicated region
  $region14: #{category_encoder.1} parent=0 // pred_check
    _
  $region15: #{category_encoder.1} parent=0 // pred_check_branch
    %286 = sbr.rel (0) target = $region17
  $region16: #{category_encoder.1} parent=0 // pred_region
    _
  $region17: #{category_encoder.1} parent=0 // pred_fallthru
    _
  // Predicated region
  $region18: #{category_encoder.1} parent=0 // pred_check
    _
  $region19: #{category_encoder.1} parent=0 // pred_check_branch
    %288 = sbr.rel (0) target = $region21
  $region20: #{category_encoder.1} parent=0 // pred_region
    _
  $region21: #{category_encoder.1} parent=0 // pred_fallthru
    _

</llo_original>
